<compile_context>
chip_gen: v7x
topology: tpu7x:2x2x1
jax: 0.10.0
libtpu: 0.0.40
codegen_flags: <defaults>
</compile_context>

<pallas_src>
import functools

import jax
import jax.numpy as jnp
from jax.experimental import pallas as pl
from jax.experimental.pallas import tpu as pltpu


def _channel_attention_kernel(x_ref, w1_ref, w2_ref, o_ref, sum_sc, max_sc,
                              *, inv_hw, hw, thw, masked):
    # x_ref:  (1, C, THW)  spatial tile of one image; channels on sublanes,
    #                      spatial on lanes (THW is a multiple of 128 or == HW)
    # w1_ref: (Cr, C)      squeezed Conv2d(C,  Cr, 1, bias=False) weight
    # w2_ref: (C, Cr)      squeezed Conv2d(Cr, C,  1, bias=False) weight
    # o_ref:  (1, C, 1)    sigmoid channel-attention weights for this image
    # sum_sc / max_sc: (C, 1) f32 running spatial sum / max accumulators
    s = pl.program_id(1)

    @pl.when(s == 0)
    def _init():
        sum_sc[...] = jnp.zeros_like(sum_sc)
        max_sc[...] = jnp.full_like(max_sc, -jnp.inf)

    x = x_ref[0].astype(jnp.float32)                        # (C, THW)
    if masked:
        # Final tile may overhang H*W; mask the out-of-range lanes
        # (neutral element 0 for the sum, -inf for the max).
        lane = jax.lax.broadcasted_iota(jnp.int32, x.shape, 1)
        valid = lane < (hw - s * thw)
        x_sum = jnp.where(valid, x, 0.0)
        x_max = jnp.where(valid, x, -jnp.inf)
    else:
        x_sum = x
        x_max = x

    sum_sc[...] += jnp.sum(x_sum, axis=-1, keepdims=True)   # XLU lane reduce
    max_sc[...] = jnp.maximum(max_sc[...],
                              jnp.max(x_max, axis=-1, keepdims=True))

    @pl.when(s == pl.num_programs(1) - 1)
    def _finalize():
        avg = sum_sc[...] * inv_hw                          # (C, 1)
        mx = max_sc[...]                                    # (C, 1)
        w1 = w1_ref[...]
        # fc(avg) + fc(max) = w2 @ (relu(w1 @ avg) + relu(w1 @ max))
        h = (jnp.maximum(jnp.dot(w1, avg,
                                 preferred_element_type=jnp.float32), 0.0)
             + jnp.maximum(jnp.dot(w1, mx,
                                   preferred_element_type=jnp.float32), 0.0))
        logits = jnp.dot(w2_ref[...], h,
                         preferred_element_type=jnp.float32)  # (C, 1)
        o_ref[0] = jax.nn.sigmoid(logits).astype(o_ref.dtype)


def _pick_hw_tile(hw, c, itemsize, budget_bytes=4 << 20):
    """Spatial (lane) tile size.

    Whole image if one (C, HW) block fits the budget (block == full dim, so
    any HW is legal); otherwise the largest multiple-of-128 tile within the
    budget (double-buffered input stays well inside VMEM on v5e/v6e/v7x).
    The tile need NOT divide HW — the kernel masks the final partial tile."""
    if c * hw * itemsize <= budget_bytes:
        return hw
    t = max(128, (budget_bytes // (c * itemsize)) // 128 * 128)
    return min(t, pl.cdiv(hw, 128) * 128)


def channel_attention(x_nchw, w1, w2):
    """ChannelAttention forward.

    x_nchw: (N, C, H, W); w1: (C//r, C); w2: (C, C//r).
    Returns the sigmoid channel-attention map of shape (N, C, 1, 1).
    """
    N, C, H, W = x_nchw.shape
    Cr = w1.shape[0]
    HW = H * W
    x = x_nchw.reshape(N, C, HW)          # free reshape: spatial on lane axis

    thw = _pick_hw_tile(HW, C, x.dtype.itemsize)
    n_s = pl.cdiv(HW, thw)
    masked = (n_s * thw != HW)            # final tile overhangs -> lane mask

    kernel = functools.partial(_channel_attention_kernel,
                               inv_hw=1.0 / HW, hw=HW, thw=thw, masked=masked)
    out = pl.pallas_call(
        kernel,
        out_shape=jax.ShapeDtypeStruct((N, C, 1), x_nchw.dtype),
        grid=(N, n_s),
        in_specs=[
            pl.BlockSpec((1, C, thw), lambda n, s: (n, 0, s)),
            pl.BlockSpec((Cr, C), lambda n, s: (0, 0)),
            pl.BlockSpec((C, Cr), lambda n, s: (0, 0)),
        ],
        out_specs=pl.BlockSpec((1, C, 1), lambda n, s: (n, 0, 0)),
        scratch_shapes=[
            pltpu.VMEM((C, 1), jnp.float32),   # running spatial sum
            pltpu.VMEM((C, 1), jnp.float32),   # running spatial max
        ],
        compiler_params=pltpu.CompilerParams(
            dimension_semantics=("parallel", "arbitrary"),
            vmem_limit_bytes=32 << 20),
    )(x, w1, w2)
    return out.reshape(N, C, 1, 1)


def init_channel_attention_params(key, in_planes, ratio=4):
    """Deterministic synthetic parameters matching the PyTorch module shapes."""
    k1, k2 = jax.random.split(key)
    cr = in_planes // ratio
    # nn.Conv2d(in_planes, cr, 1, bias=False).weight : (cr, in_planes, 1, 1)
    w1 = 0.1 * jax.random.normal(k1, (cr, in_planes, 1, 1), jnp.float32)
    # nn.Conv2d(cr, in_planes, 1, bias=False).weight : (in_planes, cr, 1, 1)
    w2 = 0.1 * jax.random.normal(k2, (in_planes, cr, 1, 1), jnp.float32)
    return dict(w1=w1[:, :, 0, 0], w2=w2[:, :, 0, 0])


def _ref_channel_attention(x, w1, w2):
    """Pure-JAX reference (matches the PyTorch module — no dropout/batchnorm
    in this block, so train/eval are identical)."""
    avg = jnp.mean(x, axis=(2, 3))                          # (N, C)
    mx = jnp.max(x, axis=(2, 3))                            # (N, C)

    def fc(v):
        return jnp.maximum(v @ w1.T, 0.0) @ w2.T            # (N, C)

    out = jax.nn.sigmoid(fc(avg) + fc(mx))
    return out[:, :, None, None]                            # (N, C, 1, 1)


if __name__ == "__main__":
    key = jax.random.PRNGKey(0)
    kx, kp = jax.random.split(key)

    # ChannelAttention(in_planes=32, ratio=4) -> hidden = 8
    N, C, H, W = 2, 32, 16, 16
    x = jax.random.normal(kx, (N, C, H, W), jnp.float32)
    params = init_channel_attention_params(kp, C, ratio=4)

    out = channel_attention(x, params["w1"], params["w2"])
    out = jax.block_until_ready(out)

    ref = jax.block_until_ready(
        _ref_channel_attention(x, params["w1"], params["w2"]))
    assert out.shape == (N, C, 1, 1)
    assert jnp.allclose(out, ref, atol=1e-5, rtol=1e-5)

    print("KERNEL_OK")
</pallas_src>

<mosaic_0001>
module attributes {stable_mosaic.version = 11 : i64} {
  func.func @_channel_attention_kernel(%arg0: i32, %arg1: i32, %arg2: memref<1x32x256xf32, #tpu.memory_space<vmem>>, %arg3: memref<8x32xf32, #tpu.memory_space<vmem>>, %arg4: memref<32x8xf32, #tpu.memory_space<vmem>>, %arg5: memref<1x32x1xf32, #tpu.memory_space<vmem>>, %arg6: memref<32x1xf32, #tpu.memory_space<vmem>>, %arg7: memref<32x1xf32, #tpu.memory_space<vmem>>) attributes {dimension_semantics = [#tpu.dimension_semantics<parallel>, #tpu.dimension_semantics<arbitrary>], iteration_bounds = array<i64: 2, 1>, scalar_prefetch = 0 : i64, scratch_operands = 2 : i64, tpu.core_type = #tpu.core_type<tc>, window_params = [{transform_indices = @transform_0, window_bounds = array<i64: 1, 32, 256>}, {pipeline_mode = #tpu.pipeline_mode<synchronous>, transform_indices = @transform_1, window_bounds = array<i64: 8, 32>}, {pipeline_mode = #tpu.pipeline_mode<synchronous>, transform_indices = @transform_2, window_bounds = array<i64: 32, 8>}, {transform_indices = @transform_3, window_bounds = array<i64: 1, 32, 1>}]} {
    %c0_i32 = arith.constant 0 : i32
    %0 = arith.cmpi eq, %arg1, %c0_i32 : i32
    %1 = arith.extui %0 : i1 to i32
    %c0_i32_0 = arith.constant 0 : i32
    %2 = arith.cmpi ne, %1, %c0_i32_0 : i32
    scf.if %2 {
      %cst_14 = arith.constant 0.000000e+00 : f32
      %18 = vector.broadcast %cst_14 : f32 to vector<32x1xf32>
      %c0_15 = arith.constant 0 : index
      %c0_16 = arith.constant 0 : index
      %19 = vector.load %arg6[%c0_15, %c0_16] : memref<32x1xf32, #tpu.memory_space<vmem>>, vector<32x1xf32>
      tpu.vector_store %arg6[%c0_15, %c0_16], %18 {strides = array<i32>} : memref<32x1xf32, #tpu.memory_space<vmem>>, vector<32x1xf32>,
      %cst_17 = arith.constant 0xFF800000 : f32
      %20 = vector.broadcast %cst_17 : f32 to vector<32x1xf32>
      %c0_18 = arith.constant 0 : index
      %c0_19 = arith.constant 0 : index
      %21 = vector.load %arg7[%c0_18, %c0_19] : memref<32x1xf32, #tpu.memory_space<vmem>>, vector<32x1xf32>
      tpu.vector_store %arg7[%c0_18, %c0_19], %20 {strides = array<i32>} : memref<32x1xf32, #tpu.memory_space<vmem>>, vector<32x1xf32>,
    } else {
    }
    %c0 = arith.constant 0 : index
    %c0_1 = arith.constant 0 : index
    %c0_2 = arith.constant 0 : index
    %3 = vector.load %arg2[%c0, %c0_1, %c0_2] : memref<1x32x256xf32, #tpu.memory_space<vmem>>, vector<1x32x256xf32>
    %4 = vector.shape_cast %3 : vector<1x32x256xf32> to vector<32x256xf32>
    %c0_3 = arith.constant 0 : index
    %c0_4 = arith.constant 0 : index
    %5 = vector.load %arg6[%c0_3, %c0_4] : memref<32x1xf32, #tpu.memory_space<vmem>>, vector<32x1xf32>
    %cst = arith.constant dense<0.000000e+00> : vector<32xf32>
    %6 = vector.multi_reduction <add>, %4, %cst [1] : vector<32x256xf32> to vector<32xf32>
    %7 = vector.shape_cast %6 : vector<32xf32> to vector<32x1xf32>
    %8 = arith.addf %5, %7 : vector<32x1xf32>
    %c0_5 = arith.constant 0 : index
    %c0_6 = arith.constant 0 : index
    %9 = vector.load %arg6[%c0_5, %c0_6] : memref<32x1xf32, #tpu.memory_space<vmem>>, vector<32x1xf32>
    tpu.vector_store %arg6[%c0_5, %c0_6], %8 {strides = array<i32>} : memref<32x1xf32, #tpu.memory_space<vmem>>, vector<32x1xf32>,
    %c0_7 = arith.constant 0 : index
    %c0_8 = arith.constant 0 : index
    %10 = vector.load %arg7[%c0_7, %c0_8] : memref<32x1xf32, #tpu.memory_space<vmem>>, vector<32x1xf32>
    %cst_9 = arith.constant dense<0xFF800000> : vector<32xf32>
    %11 = vector.multi_reduction <maximumf>, %4, %cst_9 [1] : vector<32x256xf32> to vector<32xf32>
    %12 = vector.shape_cast %11 : vector<32xf32> to vector<32x1xf32>
    %13 = arith.maximumf %10, %12 : vector<32x1xf32>
    %c0_10 = arith.constant 0 : index
    %c0_11 = arith.constant 0 : index
    %14 = vector.load %arg7[%c0_10, %c0_11] : memref<32x1xf32, #tpu.memory_space<vmem>>, vector<32x1xf32>
    tpu.vector_store %arg7[%c0_10, %c0_11], %13 {strides = array<i32>} : memref<32x1xf32, #tpu.memory_space<vmem>>, vector<32x1xf32>,
    %c0_i32_12 = arith.constant 0 : i32
    %15 = arith.cmpi eq, %arg1, %c0_i32_12 : i32
    %16 = arith.extui %15 : i1 to i32
    %c0_i32_13 = arith.constant 0 : i32
    %17 = arith.cmpi ne, %16, %c0_i32_13 : i32
    scf.if %17 {
      %c0_14 = arith.constant 0 : index
      %c0_15 = arith.constant 0 : index
      %18 = vector.load %arg6[%c0_14, %c0_15] : memref<32x1xf32, #tpu.memory_space<vmem>>, vector<32x1xf32>
      %cst_16 = arith.constant 3.906250e-03 : f32
      %19 = vector.broadcast %cst_16 : f32 to vector<32x1xf32>
      %20 = arith.mulf %18, %19 : vector<32x1xf32>
      %c0_17 = arith.constant 0 : index
      %c0_18 = arith.constant 0 : index
      %21 = vector.load %arg7[%c0_17, %c0_18] : memref<32x1xf32, #tpu.memory_space<vmem>>, vector<32x1xf32>
      %c0_19 = arith.constant 0 : index
      %c0_20 = arith.constant 0 : index
      %22 = vector.load %arg3[%c0_19, %c0_20] : memref<8x32xf32, #tpu.memory_space<vmem>>, vector<8x32xf32>
      %cst_21 = arith.constant dense<0.000000e+00> : vector<8x1xf32>
      %23 = tpu.matmul %22, %20, %cst_21 {dimension_numbers = #tpu.dot_dimension_numbers<[1], [0], [0], [1], [0, 0, 1, 1], [], []>} : vector<8x32xf32>, vector<32x1xf32>, vector<8x1xf32> -> vector<8x1xf32>
      %cst_22 = arith.constant 0.000000e+00 : f32
      %24 = vector.broadcast %cst_22 : f32 to vector<8x1xf32>
      %25 = arith.maximumf %23, %24 : vector<8x1xf32>
      %cst_23 = arith.constant dense<0.000000e+00> : vector<8x1xf32>
      %26 = tpu.matmul %22, %21, %cst_23 {dimension_numbers = #tpu.dot_dimension_numbers<[1], [0], [0], [1], [0, 0, 1, 1], [], []>} : vector<8x32xf32>, vector<32x1xf32>, vector<8x1xf32> -> vector<8x1xf32>
      %cst_24 = arith.constant 0.000000e+00 : f32
      %27 = vector.broadcast %cst_24 : f32 to vector<8x1xf32>
      %28 = arith.maximumf %26, %27 : vector<8x1xf32>
      %29 = arith.addf %25, %28 : vector<8x1xf32>
      %c0_25 = arith.constant 0 : index
      %c0_26 = arith.constant 0 : index
      %30 = vector.load %arg4[%c0_25, %c0_26] : memref<32x8xf32, #tpu.memory_space<vmem>>, vector<32x8xf32>
      %cst_27 = arith.constant dense<0.000000e+00> : vector<32x1xf32>
      %31 = tpu.matmul %30, %29, %cst_27 {dimension_numbers = #tpu.dot_dimension_numbers<[1], [0], [0], [1], [0, 0, 1, 1], [], []>} : vector<32x8xf32>, vector<8x1xf32>, vector<32x1xf32> -> vector<32x1xf32>
      %32 = arith.negf %31 : vector<32x1xf32>
      %33 = math.exp %32 : vector<32x1xf32>
      %cst_28 = arith.constant 1.000000e+00 : f32
      %34 = vector.broadcast %cst_28 : f32 to vector<32x1xf32>
      %35 = arith.addf %34, %33 : vector<32x1xf32>
      %36 = arith.divf %34, %35 : vector<32x1xf32>
      %c0_29 = arith.constant 0 : index
      %c0_30 = arith.constant 0 : index
      %c0_31 = arith.constant 0 : index
      %37 = vector.load %arg5[%c0_29, %c0_30, %c0_31] : memref<1x32x1xf32, #tpu.memory_space<vmem>>, vector<1x32x1xf32>
      %38 = vector.shape_cast %37 : vector<1x32x1xf32> to vector<32x1xf32>
      %39 = vector.shape_cast %36 : vector<32x1xf32> to vector<1x32x1xf32>
      tpu.vector_store %arg5[%c0_29, %c0_30, %c0_31], %39 {strides = array<i32>} : memref<1x32x1xf32, #tpu.memory_space<vmem>>, vector<1x32x1xf32>,
    } else {
    }
    return
  }
  func.func @transform_0(%arg0: i32, %arg1: i32) -> (i32, i32, i32) {
    %c0_i32 = arith.constant 0 : i32
    %c0_i32_0 = arith.constant 0 : i32
    return %arg0, %c0_i32, %arg1 : i32, i32, i32
  }
  func.func @transform_1(%arg0: i32, %arg1: i32) -> (i32, i32) {
    %c0_i32 = arith.constant 0 : i32
    %c0_i32_0 = arith.constant 0 : i32
    %c0_i32_1 = arith.constant 0 : i32
    return %c0_i32, %c0_i32_0 : i32, i32
  }
  func.func @transform_2(%arg0: i32, %arg1: i32) -> (i32, i32) {
    %c0_i32 = arith.constant 0 : i32
    %c0_i32_0 = arith.constant 0 : i32
    %c0_i32_1 = arith.constant 0 : i32
    return %c0_i32, %c0_i32_0 : i32, i32
  }
  func.func @transform_3(%arg0: i32, %arg1: i32) -> (i32, i32, i32) {
    %c0_i32 = arith.constant 0 : i32
    %c0_i32_0 = arith.constant 0 : i32
    %c0_i32_1 = arith.constant 0 : i32
    return %arg0, %c0_i32, %c0_i32_0 : i32, i32, i32
  }
}

</mosaic_0001>

<llo_original>
// kernel: tpu_custom_call.1
$region0: #{tpu_custom_call.1}
  #allocation0 [shape = 'u32[]', space=smem, size = 0x4, offset = 0x4, fixed_abs, tag = 'smem constant byte address 0x4 - core index']
  #allocation1 [shape = 'u32[144,128]{1,0:T(1,128)}', space=vmem, size = 0x12000, scoped, tag = 'internal scratch']
  #allocation2 [shape = 'f32[32,1]{1,0:T(8,128)}', space=vmem, size = 0x4000, scoped, tag = 'scratch operand']
  #allocation3 [shape = 'f32[32,1]{1,0:T(8,128)}', space=vmem, size = 0x4000, scoped, tag = 'scratch operand']
  %s0 = inlined_call_operand.hbm [shape: f32[2,32,256], index: 0, kind: input, shape index: {}]
  %s1 = inlined_call_operand.vmem [shape: f32[8,32], index: 1, kind: input, shape index: {}]
  %s2 = inlined_call_operand.vmem [shape: f32[32,8], index: 2, kind: input, shape index: {}]
  %s3 = inlined_call_operand.vmem [shape: f32[2,32,1], index: 3, kind: output, shape index: {}]
  %s4 = sld [smem:[#allocation0]]
  $region57: #{tpu_custom_call.1} parent=0
    _
  %s6 = ssub.s32 1, %s4
  %s7 = scalar_select 0, %s6, %s4
  $region1: #{tpu_custom_call.1} parent=0
    #allocation4 [shape = 'u8[65536]{0}', space=vmem, size = 0x10000, scoped, tag = 'input window, operand 0']
    #allocation5 [shape = 's32[2]{0}', space=sflag, size = 0x8, scoped, tag = 'scoped memory for tpu_custom_call.1']
    %8 = vsyncpa [#allocation5], 0
    %s9 = scalar_lea.sflag [#allocation5], 1
    %10 = vsyncpa %s9, 0
    loop: start=0, step=1, limit=4
    $region2: #{tpu_custom_call.1} parent=1 // loop_pre_header
      _
    $region3: #{tpu_custom_call.1} parent=1 // loop_header
      %s12 = sphi 0, %s16
      %p13 = scmp.ge.s32.totalorder %s12, 4
      %s19 = sphi 0, %s31
      %s20 = sphi 0, %s27
      %s21 = sphi 0, %s19
      %s22 = sphi 0, %s20
      %s23 = sphi 0, %s21
      %s24 = sphi 0, %s22
      %s36 = sphi 0, %s38
      %s39 = sphi 0, %s36
      %s40 = sphi 0, %s39
      %s56 = sphi 0, %s40
      %s60 = sphi 0, %s60
      %s62 = sphi 0, %s60
      %s63 = sphi 0, %s62
      %s77 = sphi 0, %s63
      %s81 = sphi 0, %s81
      %s83 = sphi 0, %s81
      %s84 = sphi 0, %s83
      %s98 = sphi 0, %s84
      %s104 = sphi 0, %s106
      %s107 = sphi 0, %s104
      %s108 = sphi 0, %s107
      %s124 = sphi 0, %s108
    $region4: #{tpu_custom_call.1} parent=1 // loop_header_branch
      %15 = sbr.rel (%p13) target = $region8
    $region5: #{tpu_custom_call.1} parent=1 // loop_body
      %s17 = ssub.s32 %s12, 1
      %s18 = ssub.s32 %s12, 2
      %s25 = sadd.s32 1, %s20
      %p26 = scmp.ge.s32.totalorder %s25, 1
      %s27 = scalar_select %p26, 0, %s25
      %s28 = sadd.s32 1, %s19
      %s29 = scalar_select %p26, %s28, %s19
      %p30 = scmp.ge.s32.totalorder %s29, 2
      %s31 = scalar_select %p30, 0, %s29
      %s32 = ssub.s32 %s19, %s31
      %s33 = ssub.s32 %s20, %s27
      %s34 = sor.u32 %s32, %s33
      %p35 = scmp.eq.s32.totalorder %s34, 0
      %s37 = sadd.s32 %s36, 1
      %s38 = scalar_select %p35, %s36, %s37
      %p41 = pneg %p35
      %p42 = scmp.eq.s32.totalorder %s12, 1
      %p43 = por %p41, %p42
      %p44 = scmp.ne.s32.totalorder %s36, %s39
      %p45 = scmp.eq.s32.totalorder %s12, 0
      %p46 = por %p44, %p45
      %p47 = scmp.ne.s32.totalorder %s36, %s39
      %p48 = scmp.eq.s32.totalorder %s17, 1
      %p49 = por %p47, %p48
      %p50 = scmp.ne.s32.totalorder %s39, %s40
      %p51 = scmp.eq.s32.totalorder %s17, 0
      %p52 = por %p50, %p51
      %p53 = scmp.ne.s32.totalorder %s39, %s40
      %p54 = scmp.eq.s32.totalorder %s18, 1
      %p55 = por %p53, %p54
      %p57 = scmp.ne.s32.totalorder %s40, %s56
      %p58 = scmp.eq.s32.totalorder %s18, 0
      %p59 = por %p57, %p58
      %s61 = sadd.s32 %s60, 1
      %p64 = scmp.eq.s32.totalorder %s12, 1
      %p65 = scmp.ne.s32.totalorder %s60, %s62
      %p66 = scmp.eq.s32.totalorder %s12, 0
      %p67 = por %p65, %p66
      %p68 = scmp.ne.s32.totalorder %s60, %s62
      %p69 = scmp.eq.s32.totalorder %s17, 1
      %p70 = por %p68, %p69
      %p71 = scmp.ne.s32.totalorder %s62, %s63
      %p72 = scmp.eq.s32.totalorder %s17, 0
      %p73 = por %p71, %p72
      %p74 = scmp.ne.s32.totalorder %s62, %s63
      %p75 = scmp.eq.s32.totalorder %s18, 1
      %p76 = por %p74, %p75
      %p78 = scmp.ne.s32.totalorder %s63, %s77
      %p79 = scmp.eq.s32.totalorder %s18, 0
      %p80 = por %p78, %p79
      %s82 = sadd.s32 %s81, 1
      %p85 = scmp.eq.s32.totalorder %s12, 1
      %p86 = scmp.ne.s32.totalorder %s81, %s83
      %p87 = scmp.eq.s32.totalorder %s12, 0
      %p88 = por %p86, %p87
      %p89 = scmp.ne.s32.totalorder %s81, %s83
      %p90 = scmp.eq.s32.totalorder %s17, 1
      %p91 = por %p89, %p90
      %p92 = scmp.ne.s32.totalorder %s83, %s84
      %p93 = scmp.eq.s32.totalorder %s17, 0
      %p94 = por %p92, %p93
      %p95 = scmp.ne.s32.totalorder %s83, %s84
      %p96 = scmp.eq.s32.totalorder %s18, 1
      %p97 = por %p95, %p96
      %p99 = scmp.ne.s32.totalorder %s84, %s98
      %p100 = scmp.eq.s32.totalorder %s18, 0
      %p101 = por %p99, %p100
      %s102 = ssub.s32 %s19, %s31
      %p103 = scmp.eq.s32.totalorder %s102, 0
      %s105 = sadd.s32 %s104, 1
      %s106 = scalar_select %p103, %s104, %s105
      %p109 = pneg %p103
      %p110 = scmp.eq.s32.totalorder %s12, 1
      %p111 = por %p109, %p110
      %p112 = scmp.ne.s32.totalorder %s104, %s107
      %p113 = scmp.eq.s32.totalorder %s12, 0
      %p114 = por %p112, %p113
      %p115 = scmp.ne.s32.totalorder %s104, %s107
      %p116 = scmp.eq.s32.totalorder %s17, 1
      %p117 = por %p115, %p116
      %p118 = scmp.ne.s32.totalorder %s107, %s108
      %p119 = scmp.eq.s32.totalorder %s17, 0
      %p120 = por %p118, %p119
      %p121 = scmp.ne.s32.totalorder %s107, %s108
      %p122 = scmp.eq.s32.totalorder %s18, 1
      %p123 = por %p121, %p122
      %p125 = scmp.ne.s32.totalorder %s108, %s124
      %p126 = scmp.eq.s32.totalorder %s18, 0
      %p127 = por %p125, %p126
      %p128 = scmp.le.s32.totalorder 1, %s12
      %p129 = scmp.lt.s32.totalorder %s12, 3
      %p130 = pnand %p128, %p129
      %p131 = pneg %p130
      // Predicated region
      $region9: #{tpu_custom_call.1} parent=5 // pred_check
        _
      $region10: #{tpu_custom_call.1} parent=5 // pred_check_branch
        %133 = sbr.rel (%p130) target = $region12
      $region11: #{tpu_custom_call.1} parent=5 // pred_region
        %s134 = ssub.s32 %s12, 1
        // Predicated region
        $region13: #{tpu_custom_call.1} parent=11 // pred_check
          %p135 = pneg %p73
        $region14: #{tpu_custom_call.1} parent=11 // pred_check_branch
          %137 = sbr.rel (%p135) target = $region16
        $region15: #{tpu_custom_call.1} parent=11 // pred_region
          _
        $region16: #{tpu_custom_call.1} parent=11 // pred_fallthru
          _
        // Predicated region
        $region17: #{tpu_custom_call.1} parent=11 // pred_check
          %p138 = pneg %p94
        $region18: #{tpu_custom_call.1} parent=11 // pred_check_branch
          %140 = sbr.rel (%p138) target = $region20
        $region19: #{tpu_custom_call.1} parent=11 // pred_region
          _
        $region20: #{tpu_custom_call.1} parent=11 // pred_fallthru
          _
      $region12: #{tpu_custom_call.1} parent=5 // pred_fallthru
        _
      %p141 = scmp.lt.s32.totalorder %s12, 2
      // Predicated region
      $region21: #{tpu_custom_call.1} parent=5 // pred_check
        %p142 = pneg %p141
      $region22: #{tpu_custom_call.1} parent=5 // pred_check_branch
        %144 = sbr.rel (%p142) target = $region24
      $region23: #{tpu_custom_call.1} parent=5 // pred_region
        // Predicated region
        $region25: #{tpu_custom_call.1} parent=23 // pred_check
          %p145 = pneg %p46
        $region26: #{tpu_custom_call.1} parent=23 // pred_check_branch
          %147 = sbr.rel (%p145) target = $region28
        $region27: #{tpu_custom_call.1} parent=23 // pred_region
          %s148 = sand.u32 %s36, 1
          %s149 = scalar_lea.sflag [#allocation5], %s148
          %s150 = sand.u32 %s36, 1
          %s151 = smul.addr %s150, 64
          %s152 = scalar_lea.vmem [#allocation4], %s151
          %s153 = smul.u32 2, %s20
          %s155 = ssub.s32 1024, 1024
          %156 = vsyncadd %s149, %s155
          %s157 = smul.addr %s19, 8
          %s158 = sadd.s32 %s153, %s157
          %s159 = smul.addr %s158, 128
          %s160 = scalar_lea.hbm %s0, %s159
          %s161 = sshll.u32 %s152, 4
          %s162 = int_to_ptr.vmem [resolvable:$true] %s161
          %167 = dma.hbm_to_vmem [thread:$0]  %s160, 1024, %s162, %s149, 256, 256, 16
        $region28: #{tpu_custom_call.1} parent=23 // pred_fallthru
          _
      $region24: #{tpu_custom_call.1} parent=5 // pred_fallthru
        _
      %p168 = scmp.le.s32.totalorder 1, %s12
      %p169 = scmp.lt.s32.totalorder %s12, 3
      %p170 = pnand %p168, %p169
      %p171 = pneg %p170
      // Predicated region
      $region29: #{tpu_custom_call.1} parent=5 // pred_check
        _
      $region30: #{tpu_custom_call.1} parent=5 // pred_check_branch
        %173 = sbr.rel (%p170) target = $region32
      $region31: #{tpu_custom_call.1} parent=5 // pred_region
        %s174 = ssub.s32 %s12, 1
        %s175 = sand.u32 %s39, 1
        %s176 = scalar_lea.sflag [#allocation5], %s175
        %s177 = sand.u32 %s39, 1
        %s178 = smul.addr %s177, 64
        %s179 = scalar_lea.vmem [#allocation4], %s178
        // Predicated region
        $region33: #{tpu_custom_call.1} parent=31 // pred_check
          %p180 = pneg %p52
        $region34: #{tpu_custom_call.1} parent=31 // pred_check_branch
          %182 = sbr.rel (%p180) target = $region36
        $region35: #{tpu_custom_call.1} parent=31 // pred_region
          %183 = dma.done %s176, 1024
        $region36: #{tpu_custom_call.1} parent=31 // pred_fallthru
          _
        %s184 = sand.u32 %s39, 1
        %s185 = scalar_lea.sflag [#allocation5], %s184
        %s186 = sand.u32 %s39, 1
        %s187 = smul.addr %s186, 64
        %s188 = scalar_lea.vmem [#allocation4], %s187
        %p189 = pneg %p52
        %p190 = pneg %p49
        %p191 = pneg %p73
        %p192 = pneg %p70
        %p193 = pneg %p94
        %p194 = pneg %p91
        %p195 = pneg %p120
        %p196 = pneg %p117
        %p197 = scmp.lt.s32.totalorder %s21, 1
        %s198 = scalar_select %p197, %s21, 1
        %s199 = smul.addr %s198, 4
        %s200 = smul.addr %s199, 8
        %s201 = scalar_lea.vmem %s3, %s200
        %s202 = smul.u32 2, %s22
        %p203 = scmp.lt.s32.totalorder %s21, 1
        %s204 = scalar_select %p203, %s21, 1
        %s205 = smul.addr %s204, 4
        %s206 = smul.addr %s205, 8
        %s207 = scalar_lea.vmem %s3, %s206
        %p208 = scmp.eq.s32.totalorder %s22, 0
        // Predicated region
        $region37: #{tpu_custom_call.1} parent=31 // pred_check
          %p209 = pneg %p208
        $region38: #{tpu_custom_call.1} parent=31 // pred_check_branch
          %211 = sbr.rel (%p209) target = $region40
        $region39: #{tpu_custom_call.1} parent=31 // pred_region
          %vm212 = vcmask 7168
          %213 = vst.msk [vmem:[#allocation2] sm:$0xff] %vm212, 0.0
          %214 = vst.msk [vmem:[#allocation2 + $0x8] sm:$0xff] %vm212, 0.0
          %215 = vst.msk [vmem:[#allocation2 + $0x10] sm:$0xff] %vm212, 0.0
          %216 = vst.msk [vmem:[#allocation2 + $0x18] sm:$0xff] %vm212, 0.0
          %217 = vst.msk [vmem:[#allocation3] sm:$0xff] %vm212, -inf
          %218 = vst.msk [vmem:[#allocation3 + $0x8] sm:$0xff] %vm212, -inf
          %219 = vst.msk [vmem:[#allocation3 + $0x10] sm:$0xff] %vm212, -inf
          %220 = vst.msk [vmem:[#allocation3 + $0x18] sm:$0xff] %vm212, -inf
        $region40: #{tpu_custom_call.1} parent=31 // pred_fallthru
          _
        %v221 = vld [vmem:[%s179] sm:$0xff]
        %v222 = vld [vmem:[%s179 + $0x8] sm:$0xff]
        %v223 = vld [vmem:[%s179 + $0x10] sm:$0xff]
        %v224 = vld [vmem:[%s179 + $0x18] sm:$0xff]
        %v225 = vld [vmem:[%s179 + $0x20] sm:$0xff]
        %v226 = vld [vmem:[%s179 + $0x28] sm:$0xff]
        %v227 = vld [vmem:[%s179 + $0x30] sm:$0xff]
        %v228 = vld [vmem:[%s179 + $0x38] sm:$0xff]
        %v229 = vld [vmem:[#allocation2] sm:$0xff]
        %v230 = vld [vmem:[#allocation2 + $0x8] sm:$0xff]
        %v231 = vld [vmem:[#allocation2 + $0x10] sm:$0xff]
        %v232 = vld [vmem:[#allocation2 + $0x18] sm:$0xff]
        %v233 = vadd.f32 %v221, %v222
        %234 = vadd.xlane.f32.xlu0 %v233
        %v235 = vpop.xlane.xlu0 %234
        %v236 = vadd.f32 %v223, %v224
        %237 = vadd.xlane.f32.xlu0 %v236
        %v238 = vpop.xlane.xlu0 %237
        %v239 = vadd.f32 %v225, %v226
        %240 = vadd.xlane.f32.xlu0 %v239
        %v241 = vpop.xlane.xlu0 %240
        %v242 = vadd.f32 %v227, %v228
        %243 = vadd.xlane.f32.xlu0 %v242
        %v244 = vpop.xlane.xlu0 %243
        %v245 = vadd.f32 %v229, %v235
        %v246 = vadd.f32 %v230, %v238
        %v247 = vadd.f32 %v231, %v241
        %v248 = vadd.f32 %v232, %v244
        %vm249 = vcmask 7168
        %250 = vst.msk [vmem:[#allocation2] sm:$0xff] %vm249, %v245
        %251 = vst.msk [vmem:[#allocation2 + $0x8] sm:$0xff] %vm249, %v246
        %252 = vst.msk [vmem:[#allocation2 + $0x10] sm:$0xff] %vm249, %v247
        %253 = vst.msk [vmem:[#allocation2 + $0x18] sm:$0xff] %vm249, %v248
        %v254 = vld [vmem:[#allocation3] sm:$0xff]
        %v255 = vld [vmem:[#allocation3 + $0x8] sm:$0xff]
        %v256 = vld [vmem:[#allocation3 + $0x10] sm:$0xff]
        %v257 = vld [vmem:[#allocation3 + $0x18] sm:$0xff]
        %v258 = vmax.f32 %v221, %v222
        %259 = vmax.xlane.f32.xlu0 %v258
        %v260 = vpop.xlane.xlu0 %259
        %v261 = vmax.f32 %v223, %v224
        %262 = vmax.xlane.f32.xlu0 %v261
        %v263 = vpop.xlane.xlu0 %262
        %v264 = vmax.f32 %v225, %v226
        %265 = vmax.xlane.f32.xlu0 %v264
        %v266 = vpop.xlane.xlu0 %265
        %v267 = vmax.f32 %v227, %v228
        %268 = vmax.xlane.f32.xlu0 %v267
        %v269 = vpop.xlane.xlu0 %268
        %v270 = vmax.f32 %v254, %v260
        %v271 = vmax.f32 %v255, %v263
        %v272 = vmax.f32 %v256, %v266
        %v273 = vmax.f32 %v257, %v269
        %274 = vst.msk [vmem:[#allocation3] sm:$0xff] %vm249, %v270
        %275 = vst.msk [vmem:[#allocation3 + $0x8] sm:$0xff] %vm249, %v271
        %276 = vst.msk [vmem:[#allocation3 + $0x10] sm:$0xff] %vm249, %v272
        %277 = vst.msk [vmem:[#allocation3 + $0x18] sm:$0xff] %vm249, %v273
        // Predicated region
        $region41: #{tpu_custom_call.1} parent=31 // pred_check
          %p278 = pneg %p208
        $region42: #{tpu_custom_call.1} parent=31 // pred_check_branch
          %280 = sbr.rel (%p278) target = $region44
        $region43: #{tpu_custom_call.1} parent=31 // pred_region
          %v281 = vld [vmem:[#allocation2] sm:$0xff]
          %v282 = vld [vmem:[#allocation2 + $0x8] sm:$0xff]
          %v283 = vld [vmem:[#allocation2 + $0x10] sm:$0xff]
          %v284 = vld [vmem:[#allocation2 + $0x18] sm:$0xff]
          %v285 = vmul.f32 %v281, 0.00390625
          %v286 = vmul.f32 %v282, 0.00390625
          %v287 = vmul.f32 %v283, 0.00390625
          %v288 = vmul.f32 %v284, 0.00390625
          %v289 = vld [vmem:[#allocation3] sm:$0xff]
          %v290 = vld [vmem:[#allocation3 + $0x8] sm:$0xff]
          %v291 = vld [vmem:[#allocation3 + $0x10] sm:$0xff]
          %v292 = vld [vmem:[#allocation3 + $0x18] sm:$0xff]
          %v293 = vld [vmem:[%s1] sm:$0xff]
          %vm294 = vcmask 261120
          %v296 = vsel %vm294, %v293, 0
          %298 = vmatprep.subr.mxu0 0.0
          %299 = vmatpush1.msra.mxu0 %v285
          %300 = vmatprep.subr.mxu0 0.0
          %301 = vmatpush1.msra.mxu0 %v286
          %302 = vmatprep.subr.mxu0 0.0
          %303 = vmatpush1.msra.mxu0 %v287
          %304 = vmatprep.subr.mxu0 0.0
          %305 = vmatpush1.msra.mxu0 %v288
          %306 = vmatprep.subr.mxu0 0.0
          %307 = vmatpush1.msra.mxu0 0.0
          %308 = vmatprep.subr.mxu0 0.0
          %309 = vmatpush1.msra.mxu0 0.0
          %310 = vmatprep.subr.mxu0 0.0
          %311 = vmatpush1.msra.mxu0 0.0
          %312 = vmatprep.subr.mxu0 0.0
          %313 = vmatpush1.msra.mxu0 0.0
          %314 = vmatprep.subr.mxu0 0.0
          %315 = vmatpush1.msra.mxu0 0.0
          %316 = vmatprep.subr.mxu0 0.0
          %317 = vmatpush1.msra.mxu0 0.0
          %318 = vmatprep.subr.mxu0 0.0
          %319 = vmatpush1.msra.mxu0 0.0
          %320 = vmatprep.subr.mxu0 0.0
          %321 = vmatpush1.msra.mxu0 0.0
          %322 = vmatprep.subr.mxu0 0.0
          %323 = vmatpush1.msra.mxu0 0.0
          %324 = vmatprep.subr.mxu0 0.0
          %325 = vmatpush1.msra.mxu0 0.0
          %326 = vmatprep.subr.mxu0 0.0
          %327 = vmatpush1.msra.mxu0 0.0
          %328 = vmatprep.subr.mxu0 0.0
          %329 = vmatpush1.msra.mxu0 0.0
          %330 = vmatprep.subr.mxu0 0.0
          %331 = vmatpush1.msra.mxu0 0.0
          %332 = vmatprep.subr.mxu0 0.0
          %333 = vmatpush1.msra.mxu0 0.0
          %334 = vmatprep.subr.mxu0 0.0
          %335 = vmatpush1.msra.mxu0 0.0
          %336 = vmatprep.subr.mxu0 0.0
          %337 = vmatpush1.msra.mxu0 0.0
          %338 = vmatprep.subr.mxu0 0.0
          %339 = vmatpush1.msra.mxu0 0.0
          %340 = vmatprep.subr.mxu0 0.0
          %341 = vmatpush1.msra.mxu0 0.0
          %342 = vmatprep.subr.mxu0 0.0
          %343 = vmatpush1.msra.mxu0 0.0
          %344 = vmatprep.subr.mxu0 0.0
          %345 = vmatpush1.msra.mxu0 0.0
          %346 = vmatprep.subr.mxu0 0.0
          %347 = vmatpush1.msra.mxu0 0.0
          %348 = vmatprep.subr.mxu0 0.0
          %349 = vmatpush1.msra.mxu0 0.0
          %350 = vmatprep.subr.mxu0 0.0
          %351 = vmatpush1.msra.mxu0 0.0
          %352 = vmatprep.subr.mxu0 0.0
          %353 = vmatpush1.msra.mxu0 0.0
          %354 = vmatprep.subr.mxu0 0.0
          %355 = vmatpush1.msra.mxu0 0.0
          %356 = vmatprep.subr.mxu0 0.0
          %357 = vmatpush1.msra.mxu0 0.0
          %358 = vmatprep.subr.mxu0 0.0
          %359 = vmatpush1.msra.mxu0 0.0
          %360 = vmatprep.subr.mxu0 0.0
          %361 = vmatpush1.msra.mxu0 0.0
          %362 = vmatprep.mubr.f32.mxu0 0.0
          %363 = vmatmul.mubr.f32.gmra.mrb[0].mxu0 %v296
          %v364 = vpop.f32.mrb[0].mxu0
          %v365 = vadd.f32 0.0, %v364
          %v366 = vpop.f32.mrb[0].mxu0
          %367 = vdwg.mxu0
          %v368 = vmax.f32 %v365, 0.0
          %369 = vmatprep.subr.mxu0 0.0
          %370 = vmatpush1.msra.mxu0 %v289
          %371 = vmatprep.subr.mxu0 0.0
          %372 = vmatpush1.msra.mxu0 %v290
          %373 = vmatprep.subr.mxu0 0.0
          %374 = vmatpush1.msra.mxu0 %v291
          %375 = vmatprep.subr.mxu0 0.0
          %376 = vmatpush1.msra.mxu0 %v292
          %377 = vmatprep.subr.mxu0 0.0
          %378 = vmatpush1.msra.mxu0 0.0
          %379 = vmatprep.subr.mxu0 0.0
          %380 = vmatpush1.msra.mxu0 0.0
          %381 = vmatprep.subr.mxu0 0.0
          %382 = vmatpush1.msra.mxu0 0.0
          %383 = vmatprep.subr.mxu0 0.0
          %384 = vmatpush1.msra.mxu0 0.0
          %385 = vmatprep.subr.mxu0 0.0
          %386 = vmatpush1.msra.mxu0 0.0
          %387 = vmatprep.subr.mxu0 0.0
          %388 = vmatpush1.msra.mxu0 0.0
          %389 = vmatprep.subr.mxu0 0.0
          %390 = vmatpush1.msra.mxu0 0.0
          %391 = vmatprep.subr.mxu0 0.0
          %392 = vmatpush1.msra.mxu0 0.0
          %393 = vmatprep.subr.mxu0 0.0
          %394 = vmatpush1.msra.mxu0 0.0
          %395 = vmatprep.subr.mxu0 0.0
          %396 = vmatpush1.msra.mxu0 0.0
          %397 = vmatprep.subr.mxu0 0.0
          %398 = vmatpush1.msra.mxu0 0.0
          %399 = vmatprep.subr.mxu0 0.0
          %400 = vmatpush1.msra.mxu0 0.0
          %401 = vmatprep.subr.mxu0 0.0
          %402 = vmatpush1.msra.mxu0 0.0
          %403 = vmatprep.subr.mxu0 0.0
          %404 = vmatpush1.msra.mxu0 0.0
          %405 = vmatprep.subr.mxu0 0.0
          %406 = vmatpush1.msra.mxu0 0.0
          %407 = vmatprep.subr.mxu0 0.0
          %408 = vmatpush1.msra.mxu0 0.0
          %409 = vmatprep.subr.mxu0 0.0
          %410 = vmatpush1.msra.mxu0 0.0
          %411 = vmatprep.subr.mxu0 0.0
          %412 = vmatpush1.msra.mxu0 0.0
          %413 = vmatprep.subr.mxu0 0.0
          %414 = vmatpush1.msra.mxu0 0.0
          %415 = vmatprep.subr.mxu0 0.0
          %416 = vmatpush1.msra.mxu0 0.0
          %417 = vmatprep.subr.mxu0 0.0
          %418 = vmatpush1.msra.mxu0 0.0
          %419 = vmatprep.subr.mxu0 0.0
          %420 = vmatpush1.msra.mxu0 0.0
          %421 = vmatprep.subr.mxu0 0.0
          %422 = vmatpush1.msra.mxu0 0.0
          %423 = vmatprep.subr.mxu0 0.0
          %424 = vmatpush1.msra.mxu0 0.0
          %425 = vmatprep.subr.mxu0 0.0
          %426 = vmatpush1.msra.mxu0 0.0
          %427 = vmatprep.subr.mxu0 0.0
          %428 = vmatpush1.msra.mxu0 0.0
          %429 = vmatprep.subr.mxu0 0.0
          %430 = vmatpush1.msra.mxu0 0.0
          %431 = vmatprep.subr.mxu0 0.0
          %432 = vmatpush1.msra.mxu0 0.0
          %433 = vmatprep.mubr.f32.mxu0 0.0
          %434 = vmatmul.mubr.f32.gmra.mrb[0].mxu0 %v296
          %v435 = vpop.f32.mrb[0].mxu0
          %v436 = vadd.f32 0.0, %v435
          %v437 = vpop.f32.mrb[0].mxu0
          %438 = vdwg.mxu0
          %v439 = vmax.f32 %v436, 0.0
          %v440 = vadd.f32 %v368, %v439
          %v441 = vld [vmem:[%s2] sm:$0xff]
          %v442 = vld [vmem:[%s2 + $0x8] sm:$0xff]
          %v443 = vld [vmem:[%s2 + $0x10] sm:$0xff]
          %v444 = vld [vmem:[%s2 + $0x18] sm:$0xff]
          %vm445 = vcmask 64512
          %v447 = vsel %vm445, %v441, 0
          %v450 = vsel %vm445, %v442, 0
          %v453 = vsel %vm445, %v443, 0
          %v456 = vsel %vm445, %v444, 0
          %458 = vmatprep.subr.mxu0 0.0
          %459 = vmatpush1.msra.mxu0 %v440
          %460 = vmatprep.subr.mxu0 0.0
          %461 = vmatpush1.msra.mxu0 0.0
          %462 = vmatprep.subr.mxu0 0.0
          %463 = vmatpush1.msra.mxu0 0.0
          %464 = vmatprep.subr.mxu0 0.0
          %465 = vmatpush1.msra.mxu0 0.0
          %466 = vmatprep.subr.mxu0 0.0
          %467 = vmatpush1.msra.mxu0 0.0
          %468 = vmatprep.subr.mxu0 0.0
          %469 = vmatpush1.msra.mxu0 0.0
          %470 = vmatprep.subr.mxu0 0.0
          %471 = vmatpush1.msra.mxu0 0.0
          %472 = vmatprep.subr.mxu0 0.0
          %473 = vmatpush1.msra.mxu0 0.0
          %474 = vmatprep.subr.mxu0 0.0
          %475 = vmatpush1.msra.mxu0 0.0
          %476 = vmatprep.subr.mxu0 0.0
          %477 = vmatpush1.msra.mxu0 0.0
          %478 = vmatprep.subr.mxu0 0.0
          %479 = vmatpush1.msra.mxu0 0.0
          %480 = vmatprep.subr.mxu0 0.0
          %481 = vmatpush1.msra.mxu0 0.0
          %482 = vmatprep.subr.mxu0 0.0
          %483 = vmatpush1.msra.mxu0 0.0
          %484 = vmatprep.subr.mxu0 0.0
          %485 = vmatpush1.msra.mxu0 0.0
          %486 = vmatprep.subr.mxu0 0.0
          %487 = vmatpush1.msra.mxu0 0.0
          %488 = vmatprep.subr.mxu0 0.0
          %489 = vmatpush1.msra.mxu0 0.0
          %490 = vmatprep.subr.mxu0 0.0
          %491 = vmatpush1.msra.mxu0 0.0
          %492 = vmatprep.subr.mxu0 0.0
          %493 = vmatpush1.msra.mxu0 0.0
          %494 = vmatprep.subr.mxu0 0.0
          %495 = vmatpush1.msra.mxu0 0.0
          %496 = vmatprep.subr.mxu0 0.0
          %497 = vmatpush1.msra.mxu0 0.0
          %498 = vmatprep.subr.mxu0 0.0
          %499 = vmatpush1.msra.mxu0 0.0
          %500 = vmatprep.subr.mxu0 0.0
          %501 = vmatpush1.msra.mxu0 0.0
          %502 = vmatprep.subr.mxu0 0.0
          %503 = vmatpush1.msra.mxu0 0.0
          %504 = vmatprep.subr.mxu0 0.0
          %505 = vmatpush1.msra.mxu0 0.0
          %506 = vmatprep.subr.mxu0 0.0
          %507 = vmatpush1.msra.mxu0 0.0
          %508 = vmatprep.subr.mxu0 0.0
          %509 = vmatpush1.msra.mxu0 0.0
          %510 = vmatprep.subr.mxu0 0.0
          %511 = vmatpush1.msra.mxu0 0.0
          %512 = vmatprep.subr.mxu0 0.0
          %513 = vmatpush1.msra.mxu0 0.0
          %514 = vmatprep.subr.mxu0 0.0
          %515 = vmatpush1.msra.mxu0 0.0
          %516 = vmatprep.subr.mxu0 0.0
          %517 = vmatpush1.msra.mxu0 0.0
          %518 = vmatprep.subr.mxu0 0.0
          %519 = vmatpush1.msra.mxu0 0.0
          %520 = vmatprep.subr.mxu0 0.0
          %521 = vmatpush1.msra.mxu0 0.0
          %522 = vmatprep.mubr.f32.mxu0 0.0
          %523 = vmatmul.mubr.f32.gmra.mrb[0].mxu0 %v447
          %v524 = vpop.f32.mrb[0].mxu0
          %v525 = vadd.f32 0.0, %v524
          %v526 = vpop.f32.mrb[0].mxu0
          %527 = vmatprep.mubr.f32.mxu0 0.0
          %528 = vmatmul.mubr.f32.gmra.mrb[0].mxu0 %v450
          %v529 = vpop.f32.mrb[0].mxu0
          %v530 = vadd.f32 0.0, %v529
          %v531 = vpop.f32.mrb[0].mxu0
          %532 = vmatprep.mubr.f32.mxu0 0.0
          %533 = vmatmul.mubr.f32.gmra.mrb[0].mxu0 %v453
          %v534 = vpop.f32.mrb[0].mxu0
          %v535 = vadd.f32 0.0, %v534
          %v536 = vpop.f32.mrb[0].mxu0
          %537 = vmatprep.mubr.f32.mxu0 0.0
          %538 = vmatmul.mubr.f32.gmra.mrb[0].mxu0 %v456
          %v539 = vpop.f32.mrb[0].mxu0
          %v540 = vadd.f32 0.0, %v539
          %v541 = vpop.f32.mrb[0].mxu0
          %542 = vdwg.mxu0
          %v543 = vxor.u32 %v525, 2147483648
          %v544 = vxor.u32 %v530, 2147483648
          %v545 = vxor.u32 %v535, 2147483648
          %v546 = vxor.u32 %v540, 2147483648
          %v547 = vmul.f32 %v543, 1.442695
          %v548 = vpow.pop %v547
          %v549 = vmul.f32 %v544, 1.442695
          %v550 = vpow.pop %v549
          %v551 = vmul.f32 %v545, 1.442695
          %v552 = vpow.pop %v551
          %v553 = vmul.f32 %v546, 1.442695
          %v554 = vpow.pop %v553
          %v555 = vadd.f32 %v548, 1.0
          %v556 = vadd.f32 %v550, 1.0
          %v557 = vadd.f32 %v552, 1.0
          %v558 = vadd.f32 %v554, 1.0
          %v559 = vrcp.pop %v555
          %v560 = vmul.f32 1.0, %v559
          %v561 = vrcp.pop %v556
          %v562 = vmul.f32 1.0, %v561
          %v563 = vrcp.pop %v557
          %v564 = vmul.f32 1.0, %v563
          %v565 = vrcp.pop %v558
          %v566 = vmul.f32 1.0, %v565
          %567 = vst.msk [vmem:[%s207] sm:$0xff] %vm249, %v560
          %568 = vst.msk [vmem:[%s207 + $0x8] sm:$0xff] %vm249, %v562
          %569 = vst.msk [vmem:[%s207 + $0x10] sm:$0xff] %vm249, %v564
          %570 = vst.msk [vmem:[%s207 + $0x18] sm:$0xff] %vm249, %v566
        $region44: #{tpu_custom_call.1} parent=31 // pred_fallthru
          _
        %p571 = scmp.lt.s32.totalorder %s21, 1
        %s572 = scalar_select %p571, %s21, 1
        %s573 = smul.addr %s572, 4
        %s574 = smul.addr %s573, 8
        %s575 = scalar_lea.vmem %s3, %s574
        // Predicated region
        $region45: #{tpu_custom_call.1} parent=31 // pred_check
          %p576 = pneg %p117
        $region46: #{tpu_custom_call.1} parent=31 // pred_check_branch
          %578 = sbr.rel (%p576) target = $region48
        $region47: #{tpu_custom_call.1} parent=31 // pred_region
          _
        $region48: #{tpu_custom_call.1} parent=31 // pred_fallthru
          _
      $region32: #{tpu_custom_call.1} parent=5 // pred_fallthru
        _
      %p579 = scmp.le.s32.totalorder 2, %s12
      // Predicated region
      $region49: #{tpu_custom_call.1} parent=5 // pred_check
        %p580 = pneg %p579
      $region50: #{tpu_custom_call.1} parent=5 // pred_check_branch
        %582 = sbr.rel (%p580) target = $region52
      $region51: #{tpu_custom_call.1} parent=5 // pred_region
        %s583 = ssub.s32 %s12, 2
        // Predicated region
        $region53: #{tpu_custom_call.1} parent=51 // pred_check
          %p584 = pneg %p123
        $region54: #{tpu_custom_call.1} parent=51 // pred_check_branch
          %586 = sbr.rel (%p584) target = $region56
        $region55: #{tpu_custom_call.1} parent=51 // pred_region
          %p587 = scmp.lt.s32.totalorder %s23, 1
          %s588 = scalar_select %p587, %s23, 1
          %s589 = smul.addr %s588, 4
          %s590 = smul.addr %s589, 8
          %s591 = scalar_lea.vmem %s3, %s590
        $region56: #{tpu_custom_call.1} parent=51 // pred_fallthru
          _
      $region52: #{tpu_custom_call.1} parent=5 // pred_fallthru
        _
    $region6: #{tpu_custom_call.1} parent=1 // loop_footer
      %s16 = sadd.s32 1, %s12
    $region7: #{tpu_custom_call.1} parent=1 // loop_footer_branch
      %11 = sbr.rel target = $region3
    $region8: #{tpu_custom_call.1} parent=1 // loop_exit
      _
    %592 = vsyncpa [#allocation5], 1
    %s593 = scalar_lea.sflag [#allocation5], 1
    %594 = vsyncpa %s593, 1

</llo_original>
